<compile_context>
chip_gen: v5e
topology: v5e:2x2
jax: 0.10.0
libtpu: 0.0.40
codegen_flags: <defaults>
</compile_context>

<pallas_src>
import math

import jax
import jax.numpy as jnp
from jax.experimental import pallas as pl
from jax.experimental.pallas import tpu as pltpu

LN_EPS = 1e-5  # nn.LayerNorm default


def _merge_norm_reduce_kernel(x_ref, we_ref, wo_ref, cs_ref, b_ref, o_ref):
    # x_ref : (tr, 2, W2, 2C)  merged-row block; dim 1 = h parity,
    #                          last-dim channels = [w-even C | w-odd C]
    # we_ref: (2C, C_out)      gamma-folded weight rows for even-h channels (x0|x2)
    # wo_ref: (2C, C_out)      gamma-folded weight rows for odd-h  channels (x1|x3)
    # cs_ref: (1, C_out)       column sums of the full gamma-folded weight (f32)
    # b_ref : (1, C_out)       beta @ W (f32)
    # o_ref : (tr*W2, C_out)
    tr, _, w2, c2 = x_ref.shape
    toks = tr * w2
    n_feat = 2 * c2  # = 4*C

    xv = x_ref[...]
    xe = xv[:, 0].reshape(toks, c2)   # even-h rows (torch x0 | x2 channels)
    xo = xv[:, 1].reshape(toks, c2)   # odd-h  rows (torch x1 | x3 channels)
    # TODO(synk): when W2 % 8 != 0 this collapse is a real VMEM relayout; a fully
    #             layout-free path would need dot_general on the 3-D block.

    # Single-pass LayerNorm statistics over the virtual 4C features, in f32.
    xef = xe.astype(jnp.float32)
    xof = xo.astype(jnp.float32)
    inv_n = 1.0 / n_feat
    mean = (jnp.sum(xef, axis=-1, keepdims=True)
            + jnp.sum(xof, axis=-1, keepdims=True)) * inv_n
    ex2 = (jnp.sum(xef * xef, axis=-1, keepdims=True)
           + jnp.sum(xof * xof, axis=-1, keepdims=True)) * inv_n
    var = ex2 - mean * mean
    inv = jax.lax.rsqrt(var + LN_EPS)            # (toks, 1)

    # GEMM on the raw (uncentered) rows; mean subtraction folded in via the
    # precomputed weight column-sums, per-token scale applied on the output.
    gdt = we_ref.dtype
    y = jnp.dot(xe.astype(gdt), we_ref[...], preferred_element_type=jnp.float32)
    y = y + jnp.dot(xo.astype(gdt), wo_ref[...], preferred_element_type=jnp.float32)
    y = (y - mean * cs_ref[...]) * inv + b_ref[...]
    o_ref[...] = y.astype(o_ref.dtype)


def _vmem_capacity_bytes():
    try:
        info = pltpu.get_tpu_info()
        cap = getattr(info, "vmem_capacity_bytes", None)
        if cap:
            return int(cap)
    except Exception:
        pass
    return 64 * 1024 * 1024   # conservative fallback (v7x-sized VMEM)


def patch_merging_2d(x, gamma, beta, w_t, *, block_rows=None,
                     gemm_dtype=jnp.bfloat16):
    """PatchMerging2D forward (channel_last).

    x:     (B, H, W, C)   activations (bf16 recommended: kernel is HBM-bound)
    gamma: (4C,)          LayerNorm weight
    beta:  (4C,)          LayerNorm bias
    w_t:   (4C, C_out)    reduction weight, transposed from PyTorch's (C_out, 4C)
    returns (B, ceil(H/2), ceil(W/2), C_out), dtype == x.dtype
    """
    B, H, W, C = x.shape
    if (H % 2 != 0) or (W % 2 != 0):
        x = jnp.pad(x, ((0, 0), (0, H % 2), (0, W % 2), (0, 0)))
        H, W = x.shape[1], x.shape[2]
    H2, W2 = H // 2, W // 2
    C4 = 4 * C
    C_out = w_t.shape[1]
    R = B * H2

    # Free contiguous view: (B, H, W, C) -> (B*H2, 2, W2, 2*C)
    # x_r[r, ph, w2, pw*C + c] == x[b, 2*h2 + ph, 2*w2 + pw, c],  r = b*H2 + h2
    x_r = x.reshape(R, 2, W2, 2 * C)

    # Fold LayerNorm affine into the weight / an output bias, and permute weight
    # rows into the kernel's channel order:
    #   even-h block channels = [(h0,w0)C, (h0,w1)C] -> torch rows [x0, x2]
    #   odd -h block channels = [(h1,w0)C, (h1,w1)C] -> torch rows [x1, x3]
    w_f = w_t.astype(jnp.float32)                       # (4C, C_out)
    w_eff = gamma.astype(jnp.float32)[:, None] * w_f
    w_e = jnp.concatenate([w_eff[0:C], w_eff[2 * C:3 * C]], axis=0).astype(gemm_dtype)
    w_o = jnp.concatenate([w_eff[C:2 * C], w_eff[3 * C:4 * C]], axis=0).astype(gemm_dtype)
    colsum = jnp.sum(w_eff, axis=0).reshape(1, C_out)          # f32
    bias_eff = (beta.astype(jnp.float32) @ w_f).reshape(1, C_out)  # f32

    # ---- generation-aware tiling -------------------------------------------
    vmem_cap = _vmem_capacity_bytes()
    big_vmem = vmem_cap >= (96 << 20)          # v5e / v6e (128 MiB) vs v7x (64 MiB)
    vmem_limit = (96 << 20) if big_vmem else (48 << 20)
    ws_cap = (40 << 20) if big_vmem else (16 << 20)
    tok_target = 2048 if big_vmem else 1024    # merged tokens per grid step

    isz = jnp.dtype(x.dtype).itemsize
    wsz = jnp.dtype(gemm_dtype).itemsize

    def _vmem_est(t):
        toks = t * W2
        return (toks * C4 * isz * 2                 # (tr,2,W2,2C) block, 2 buffers
                + toks * C_out * isz * 2            # (tr*W2,C_out) block, 2 buffers
                + 2 * (2 * C) * C_out * wsz * 2     # w_e / w_o, 2 buffers
                + 2 * toks * C4 * 4                 # f32 stat temporaries
                + 2 * toks * C4 * wsz               # GEMM operand copies (worst case)
                + toks * C_out * 4)                 # f32 accumulator

    # tr*W2 must be a multiple of 8 whenever the grid has >1 step (2-D out block).
    m_align = 8 // math.gcd(W2, 8)

    def _legal(t):
        t = max(1, min(int(t), R))
        if t < R:
            t = max(m_align, (t // m_align) * m_align)
            t = min(t, R)
        return t

    if block_rows is not None:
        tr = _legal(block_rows)
        while tr > m_align and _vmem_est(tr) > ws_cap:
            tr = _legal(tr // 2)
    else:
        tr = _legal(tok_target // max(W2, 1))
        while tr > m_align and _vmem_est(tr) > ws_cap:
            tr = _legal(tr // 2)
        # Even grid-step count (>=2, ideally >=4): shards evenly across v7x's
        # two TensorCores / megacore when the axis is "parallel".
        if R >= 2:
            g = pl.cdiv(R, tr)
            g = max(g, 4 if R >= 4 else 2)
            if g % 2:
                g += 1
            tr = _legal(pl.cdiv(R, g))

    grid = (pl.cdiv(R, tr),)
    n_tok = R * W2

    cost = pl.CostEstimate(
        flops=int(2 * n_tok * C4 * C_out + 6 * n_tok * C4 + 4 * n_tok * C_out),
        transcendentals=int(n_tok),
        bytes_accessed=int(n_tok * C4 * isz + n_tok * C_out * isz
                           + 2 * (2 * C) * C_out * wsz + 2 * C_out * 4),
    )

    out = pl.pallas_call(
        _merge_norm_reduce_kernel,
        out_shape=jax.ShapeDtypeStruct((R * W2, C_out), x.dtype),
        grid=grid,
        in_specs=[
            pl.BlockSpec((tr, 2, W2, 2 * C), lambda i: (i, 0, 0, 0)),  # merged rows
            pl.BlockSpec((2 * C, C_out), lambda i: (0, 0)),            # w_e
            pl.BlockSpec((2 * C, C_out), lambda i: (0, 0)),            # w_o
            pl.BlockSpec((1, C_out), lambda i: (0, 0)),                # colsum
            pl.BlockSpec((1, C_out), lambda i: (0, 0)),                # beta @ W
        ],
        out_specs=pl.BlockSpec((tr * W2, C_out), lambda i: (i, 0)),
        compiler_params=pltpu.CompilerParams(
            dimension_semantics=("parallel",),
            vmem_limit_bytes=vmem_limit,
        ),
        cost_estimate=cost,
    )(x_r, w_e, w_o, colsum, bias_eff)

    return out.reshape(B, H2, W2, C_out)


def _reference(x, gamma, beta, w_t):
    """Pure-JAX f32 reference matching the PyTorch module."""
    B, H, W, C = x.shape
    if (H % 2 != 0) or (W % 2 != 0):
        x = jnp.pad(x, ((0, 0), (0, H % 2), (0, W % 2), (0, 0)))
    x0 = x[:, 0::2, 0::2, :]
    x1 = x[:, 1::2, 0::2, :]
    x2 = x[:, 0::2, 1::2, :]
    x3 = x[:, 1::2, 1::2, :]
    xm = jnp.concatenate([x0, x1, x2, x3], axis=-1).astype(jnp.float32)
    mean = jnp.mean(xm, axis=-1, keepdims=True)
    var = jnp.mean((xm - mean) ** 2, axis=-1, keepdims=True)
    xn = (xm - mean) * jax.lax.rsqrt(var + LN_EPS) * gamma + beta
    return jnp.dot(xn, w_t.astype(jnp.float32))


if __name__ == "__main__":
    key = jax.random.PRNGKey(0)
    B, H, W, dim = 2, 16, 16, 4          # input (B, H, W, C), channel-last
    C4, C_out = 4 * dim, 2 * dim         # out_dim = -1 -> 2*dim

    k_x, k_w, k_g, k_b = jax.random.split(key, 4)
    x = jax.random.normal(k_x, (B, H, W, dim), dtype=jnp.float32)

    # PatchMerging2D params: reduction nn.Linear(4*dim, 2*dim, bias=False) weight
    # (2*dim, 4*dim), LayerNorm(4*dim) weight/bias.
    w_torch = jax.random.normal(k_w, (C_out, C4), dtype=jnp.float32) * 0.05
    w_t = w_torch.T                              # (4C, C_out) so y = x_norm @ w_t
    gamma = 1.0 + 0.01 * jax.random.normal(k_g, (C4,), dtype=jnp.float32)
    beta = 0.01 * jax.random.normal(k_b, (C4,), dtype=jnp.float32)

    ref = _reference(x, gamma, beta, w_t)

    # f32 activations + f32 GEMM: tight check.
    out_f32 = jax.block_until_ready(
        patch_merging_2d(x, gamma, beta, w_t, gemm_dtype=jnp.float32))
    assert out_f32.shape == (B, H // 2, W // 2, C_out), out_f32.shape
    err = float(jnp.max(jnp.abs(out_f32.astype(jnp.float32) - ref)))
    assert err < 1e-3, err

    # bf16 activations through HBM + bf16 GEMM (f32 accumulation): loose check.
    x_bf16 = x.astype(jnp.bfloat16)
    ref_bf = _reference(x_bf16.astype(jnp.float32), gamma, beta, w_t)
    out_bf16 = jax.block_until_ready(patch_merging_2d(x_bf16, gamma, beta, w_t))
    assert out_bf16.shape == (B, H // 2, W // 2, C_out), out_bf16.shape
    assert out_bf16.dtype == jnp.bfloat16, out_bf16.dtype
    err_bf = float(jnp.max(jnp.abs(out_bf16.astype(jnp.float32) - ref_bf)))
    assert err_bf < 7e-2, err_bf

    # Odd H/W: exercise the padding branch.
    x_odd = x[:, :15, :15, :]
    ref_odd = _reference(x_odd, gamma, beta, w_t)
    out_odd = jax.block_until_ready(
        patch_merging_2d(x_odd, gamma, beta, w_t, gemm_dtype=jnp.float32))
    assert out_odd.shape == ref_odd.shape, (out_odd.shape, ref_odd.shape)
    err_odd = float(jnp.max(jnp.abs(out_odd.astype(jnp.float32) - ref_odd)))
    assert err_odd < 1e-3, err_odd

    print("KERNEL_OK")
</pallas_src>

<mosaic_0001>
module attributes {stable_mosaic.version = 11 : i64} {
  func.func @_merge_norm_reduce_kernel(%arg0: i32, %arg1: memref<4x2x8x8xf32, #tpu.memory_space<vmem>>, %arg2: memref<8x8xf32, #tpu.memory_space<vmem>>, %arg3: memref<8x8xf32, #tpu.memory_space<vmem>>, %arg4: memref<1x8xf32, #tpu.memory_space<vmem>>, %arg5: memref<1x8xf32, #tpu.memory_space<vmem>>, %arg6: memref<32x8xf32, #tpu.memory_space<vmem>>) attributes {dimension_semantics = [#tpu.dimension_semantics<parallel>], iteration_bounds = array<i64: 4>, scalar_prefetch = 0 : i64, scratch_operands = 0 : i64, tpu.core_type = #tpu.core_type<tc>, window_params = [{transform_indices = @transform_0, window_bounds = array<i64: 4, 2, 8, 8>}, {pipeline_mode = #tpu.pipeline_mode<synchronous>, transform_indices = @transform_1, window_bounds = array<i64: 8, 8>}, {pipeline_mode = #tpu.pipeline_mode<synchronous>, transform_indices = @transform_2, window_bounds = array<i64: 8, 8>}, {pipeline_mode = #tpu.pipeline_mode<synchronous>, transform_indices = @transform_3, window_bounds = array<i64: 1, 8>}, {pipeline_mode = #tpu.pipeline_mode<synchronous>, transform_indices = @transform_4, window_bounds = array<i64: 1, 8>}, {transform_indices = @transform_5, window_bounds = array<i64: 32, 8>}]} {
    %c0 = arith.constant 0 : index
    %c0_0 = arith.constant 0 : index
    %c0_1 = arith.constant 0 : index
    %c0_2 = arith.constant 0 : index
    %0 = vector.load %arg1[%c0, %c0_0, %c0_1, %c0_2] : memref<4x2x8x8xf32, #tpu.memory_space<vmem>>, vector<4x2x8x8xf32>
    %1 = vector.extract_strided_slice %0 {offsets = [0, 0, 0, 0], sizes = [4, 1, 8, 8], strides = [1, 1, 1, 1]} : vector<4x2x8x8xf32> to vector<4x1x8x8xf32>
    %2 = vector.shape_cast %1 : vector<4x1x8x8xf32> to vector<4x8x8xf32>
    %3 = vector.shape_cast %2 : vector<4x8x8xf32> to vector<32x8xf32>
    %4 = vector.extract_strided_slice %0 {offsets = [0, 1, 0, 0], sizes = [4, 1, 8, 8], strides = [1, 1, 1, 1]} : vector<4x2x8x8xf32> to vector<4x1x8x8xf32>
    %5 = vector.shape_cast %4 : vector<4x1x8x8xf32> to vector<4x8x8xf32>
    %6 = vector.shape_cast %5 : vector<4x8x8xf32> to vector<32x8xf32>
    %cst = arith.constant dense<0.000000e+00> : vector<32xf32>
    %7 = vector.multi_reduction <add>, %3, %cst [1] : vector<32x8xf32> to vector<32xf32>
    %8 = vector.shape_cast %7 : vector<32xf32> to vector<32x1xf32>
    %cst_3 = arith.constant dense<0.000000e+00> : vector<32xf32>
    %9 = vector.multi_reduction <add>, %6, %cst_3 [1] : vector<32x8xf32> to vector<32xf32>
    %10 = vector.shape_cast %9 : vector<32xf32> to vector<32x1xf32>
    %11 = arith.addf %8, %10 : vector<32x1xf32>
    %cst_4 = arith.constant 6.250000e-02 : f32
    %12 = vector.broadcast %cst_4 : f32 to vector<32x1xf32>
    %13 = arith.mulf %11, %12 : vector<32x1xf32>
    %14 = arith.mulf %3, %3 : vector<32x8xf32>
    %cst_5 = arith.constant dense<0.000000e+00> : vector<32xf32>
    %15 = vector.multi_reduction <add>, %14, %cst_5 [1] : vector<32x8xf32> to vector<32xf32>
    %16 = vector.shape_cast %15 : vector<32xf32> to vector<32x1xf32>
    %17 = arith.mulf %6, %6 : vector<32x8xf32>
    %cst_6 = arith.constant dense<0.000000e+00> : vector<32xf32>
    %18 = vector.multi_reduction <add>, %17, %cst_6 [1] : vector<32x8xf32> to vector<32xf32>
    %19 = vector.shape_cast %18 : vector<32xf32> to vector<32x1xf32>
    %20 = arith.addf %16, %19 : vector<32x1xf32>
    %cst_7 = arith.constant 6.250000e-02 : f32
    %21 = vector.broadcast %cst_7 : f32 to vector<32x1xf32>
    %22 = arith.mulf %20, %21 : vector<32x1xf32>
    %23 = arith.mulf %13, %13 : vector<32x1xf32>
    %24 = arith.subf %22, %23 : vector<32x1xf32>
    %cst_8 = arith.constant 9.99999974E-6 : f32
    %25 = vector.broadcast %cst_8 : f32 to vector<32x1xf32>
    %26 = arith.addf %24, %25 : vector<32x1xf32>
    %27 = math.rsqrt %26 : vector<32x1xf32>
    %c0_9 = arith.constant 0 : index
    %c0_10 = arith.constant 0 : index
    %28 = vector.load %arg2[%c0_9, %c0_10] : memref<8x8xf32, #tpu.memory_space<vmem>>, vector<8x8xf32>
    %cst_11 = arith.constant dense<0.000000e+00> : vector<32x8xf32>
    %29 = tpu.matmul %3, %28, %cst_11 {dimension_numbers = #tpu.dot_dimension_numbers<[1], [0], [0], [1], [0, 0, 1, 1], [], []>} : vector<32x8xf32>, vector<8x8xf32>, vector<32x8xf32> -> vector<32x8xf32>
    %c0_12 = arith.constant 0 : index
    %c0_13 = arith.constant 0 : index
    %30 = vector.load %arg3[%c0_12, %c0_13] : memref<8x8xf32, #tpu.memory_space<vmem>>, vector<8x8xf32>
    %cst_14 = arith.constant dense<0.000000e+00> : vector<32x8xf32>
    %31 = tpu.matmul %6, %30, %cst_14 {dimension_numbers = #tpu.dot_dimension_numbers<[1], [0], [0], [1], [0, 0, 1, 1], [], []>} : vector<32x8xf32>, vector<8x8xf32>, vector<32x8xf32> -> vector<32x8xf32>
    %32 = arith.addf %29, %31 : vector<32x8xf32>
    %c0_15 = arith.constant 0 : index
    %c0_16 = arith.constant 0 : index
    %33 = vector.load %arg4[%c0_15, %c0_16] : memref<1x8xf32, #tpu.memory_space<vmem>>, vector<1x8xf32>
    %34 = vector.broadcast %13 : vector<32x1xf32> to vector<32x8xf32>
    %35 = vector.broadcast %33 : vector<1x8xf32> to vector<32x8xf32>
    %36 = arith.mulf %34, %35 : vector<32x8xf32>
    %37 = arith.subf %32, %36 : vector<32x8xf32>
    %38 = vector.broadcast %27 : vector<32x1xf32> to vector<32x8xf32>
    %39 = arith.mulf %37, %38 : vector<32x8xf32>
    %c0_17 = arith.constant 0 : index
    %c0_18 = arith.constant 0 : index
    %40 = vector.load %arg5[%c0_17, %c0_18] : memref<1x8xf32, #tpu.memory_space<vmem>>, vector<1x8xf32>
    %41 = vector.broadcast %40 : vector<1x8xf32> to vector<32x8xf32>
    %42 = arith.addf %39, %41 : vector<32x8xf32>
    %c0_19 = arith.constant 0 : index
    %c0_20 = arith.constant 0 : index
    %43 = vector.load %arg6[%c0_19, %c0_20] : memref<32x8xf32, #tpu.memory_space<vmem>>, vector<32x8xf32>
    tpu.vector_store %arg6[%c0_19, %c0_20], %42 {strides = array<i32>} : memref<32x8xf32, #tpu.memory_space<vmem>>, vector<32x8xf32>,
    return
  }
  func.func @transform_0(%arg0: i32) -> (i32, i32, i32, i32) {
    %c0_i32 = arith.constant 0 : i32
    %c0_i32_0 = arith.constant 0 : i32
    %c0_i32_1 = arith.constant 0 : i32
    %c0_i32_2 = arith.constant 0 : i32
    return %arg0, %c0_i32, %c0_i32_0, %c0_i32_1 : i32, i32, i32, i32
  }
  func.func @transform_1(%arg0: i32) -> (i32, i32) {
    %c0_i32 = arith.constant 0 : i32
    %c0_i32_0 = arith.constant 0 : i32
    %c0_i32_1 = arith.constant 0 : i32
    return %c0_i32, %c0_i32_0 : i32, i32
  }
  func.func @transform_2(%arg0: i32) -> (i32, i32) {
    %c0_i32 = arith.constant 0 : i32
    %c0_i32_0 = arith.constant 0 : i32
    %c0_i32_1 = arith.constant 0 : i32
    return %c0_i32, %c0_i32_0 : i32, i32
  }
  func.func @transform_3(%arg0: i32) -> (i32, i32) {
    %c0_i32 = arith.constant 0 : i32
    %c0_i32_0 = arith.constant 0 : i32
    %c0_i32_1 = arith.constant 0 : i32
    return %c0_i32, %c0_i32_0 : i32, i32
  }
  func.func @transform_4(%arg0: i32) -> (i32, i32) {
    %c0_i32 = arith.constant 0 : i32
    %c0_i32_0 = arith.constant 0 : i32
    %c0_i32_1 = arith.constant 0 : i32
    return %c0_i32, %c0_i32_0 : i32, i32
  }
  func.func @transform_5(%arg0: i32) -> (i32, i32) {
    %c0_i32 = arith.constant 0 : i32
    %c0_i32_0 = arith.constant 0 : i32
    return %arg0, %c0_i32 : i32, i32
  }
}

</mosaic_0001>

<llo_original>
// kernel: tpu_custom_call.1
$region0: #{tpu_custom_call.1}
  #allocation0 [shape = 'u32[]', space=smem, size = 0x4, offset = 0x4, fixed_abs, tag = 'smem constant byte address 0x4 - core index']
  #allocation1 [shape = 'u32[72,128]{1,0:T(1,128)}', space=vmem, size = 0x9000, scoped, tag = 'internal scratch']
  %s0 = inlined_call_operand.vmem [shape: f32[16,2,8,8], index: 0, kind: input, shape index: {}]
  %s1 = inlined_call_operand.vmem [shape: f32[8,8], index: 1, kind: input, shape index: {}]
  %s2 = inlined_call_operand.vmem [shape: f32[8,8], index: 2, kind: input, shape index: {}]
  %s3 = inlined_call_operand.vmem [shape: f32[1,8], index: 3, kind: input, shape index: {}]
  %s4 = inlined_call_operand.vmem [shape: f32[1,8], index: 4, kind: input, shape index: {}]
  %s5 = inlined_call_operand.vmem [shape: f32[128,8], index: 5, kind: output, shape index: {}]
  %s6 = sld [smem:[#allocation0]]
  $region53: #{tpu_custom_call.1} parent=0
    _
  %s8 = ssub.s32 1, %s6
  %s9 = scalar_select 0, %s8, %s6
  loop: start=0, step=1, limit=6
  $region2: #{tpu_custom_call.1} parent=0 // loop_pre_header
    _
  $region3: #{tpu_custom_call.1} parent=0 // loop_header
    %s11 = sphi 0, %s15
    %p12 = scmp.ge.s32.totalorder %s11, 6
    %s21 = sphi 0, %s23
    %s24 = sphi 0, %s21
    %s25 = sphi 0, %s24
    %s41 = sphi 0, %s25
    %s45 = sphi 0, %s45
    %s47 = sphi 0, %s45
    %s48 = sphi 0, %s47
    %s62 = sphi 0, %s48
    %s66 = sphi 0, %s66
    %s68 = sphi 0, %s66
    %s69 = sphi 0, %s68
    %s83 = sphi 0, %s69
    %s87 = sphi 0, %s87
    %s89 = sphi 0, %s87
    %s90 = sphi 0, %s89
    %s104 = sphi 0, %s90
    %s108 = sphi 0, %s108
    %s110 = sphi 0, %s108
    %s111 = sphi 0, %s110
    %s125 = sphi 0, %s111
    %s131 = sphi 0, %s133
    %s134 = sphi 0, %s131
    %s135 = sphi 0, %s134
    %s151 = sphi 0, %s135
  $region4: #{tpu_custom_call.1} parent=0 // loop_header_branch
    %14 = sbr.rel (%p12) target = $region8
  $region5: #{tpu_custom_call.1} parent=0 // loop_body
    %s16 = ssub.s32 %s11, 1
    %s17 = ssub.s32 %s11, 2
    %s18 = sadd.s32 %s11, 1
    %s19 = ssub.s32 %s11, %s18
    %p20 = scmp.eq.s32.totalorder %s19, 0
    %s22 = sadd.s32 %s21, 1
    %s23 = scalar_select %p20, %s21, %s22
    %p26 = pneg %p20
    %p27 = scmp.eq.s32.totalorder %s11, 3
    %p28 = por %p26, %p27
    %p29 = scmp.ne.s32.totalorder %s21, %s24
    %p30 = scmp.eq.s32.totalorder %s11, 0
    %p31 = por %p29, %p30
    %p32 = scmp.ne.s32.totalorder %s21, %s24
    %p33 = scmp.eq.s32.totalorder %s16, 3
    %p34 = por %p32, %p33
    %p35 = scmp.ne.s32.totalorder %s24, %s25
    %p36 = scmp.eq.s32.totalorder %s16, 0
    %p37 = por %p35, %p36
    %p38 = scmp.ne.s32.totalorder %s24, %s25
    %p39 = scmp.eq.s32.totalorder %s17, 3
    %p40 = por %p38, %p39
    %p42 = scmp.ne.s32.totalorder %s25, %s41
    %p43 = scmp.eq.s32.totalorder %s17, 0
    %p44 = por %p42, %p43
    %s46 = sadd.s32 %s45, 1
    %p49 = scmp.eq.s32.totalorder %s11, 3
    %p50 = scmp.ne.s32.totalorder %s45, %s47
    %p51 = scmp.eq.s32.totalorder %s11, 0
    %p52 = por %p50, %p51
    %p53 = scmp.ne.s32.totalorder %s45, %s47
    %p54 = scmp.eq.s32.totalorder %s16, 3
    %p55 = por %p53, %p54
    %p56 = scmp.ne.s32.totalorder %s47, %s48
    %p57 = scmp.eq.s32.totalorder %s16, 0
    %p58 = por %p56, %p57
    %p59 = scmp.ne.s32.totalorder %s47, %s48
    %p60 = scmp.eq.s32.totalorder %s17, 3
    %p61 = por %p59, %p60
    %p63 = scmp.ne.s32.totalorder %s48, %s62
    %p64 = scmp.eq.s32.totalorder %s17, 0
    %p65 = por %p63, %p64
    %s67 = sadd.s32 %s66, 1
    %p70 = scmp.eq.s32.totalorder %s11, 3
    %p71 = scmp.ne.s32.totalorder %s66, %s68
    %p72 = scmp.eq.s32.totalorder %s11, 0
    %p73 = por %p71, %p72
    %p74 = scmp.ne.s32.totalorder %s66, %s68
    %p75 = scmp.eq.s32.totalorder %s16, 3
    %p76 = por %p74, %p75
    %p77 = scmp.ne.s32.totalorder %s68, %s69
    %p78 = scmp.eq.s32.totalorder %s16, 0
    %p79 = por %p77, %p78
    %p80 = scmp.ne.s32.totalorder %s68, %s69
    %p81 = scmp.eq.s32.totalorder %s17, 3
    %p82 = por %p80, %p81
    %p84 = scmp.ne.s32.totalorder %s69, %s83
    %p85 = scmp.eq.s32.totalorder %s17, 0
    %p86 = por %p84, %p85
    %s88 = sadd.s32 %s87, 1
    %p91 = scmp.eq.s32.totalorder %s11, 3
    %p92 = scmp.ne.s32.totalorder %s87, %s89
    %p93 = scmp.eq.s32.totalorder %s11, 0
    %p94 = por %p92, %p93
    %p95 = scmp.ne.s32.totalorder %s87, %s89
    %p96 = scmp.eq.s32.totalorder %s16, 3
    %p97 = por %p95, %p96
    %p98 = scmp.ne.s32.totalorder %s89, %s90
    %p99 = scmp.eq.s32.totalorder %s16, 0
    %p100 = por %p98, %p99
    %p101 = scmp.ne.s32.totalorder %s89, %s90
    %p102 = scmp.eq.s32.totalorder %s17, 3
    %p103 = por %p101, %p102
    %p105 = scmp.ne.s32.totalorder %s90, %s104
    %p106 = scmp.eq.s32.totalorder %s17, 0
    %p107 = por %p105, %p106
    %s109 = sadd.s32 %s108, 1
    %p112 = scmp.eq.s32.totalorder %s11, 3
    %p113 = scmp.ne.s32.totalorder %s108, %s110
    %p114 = scmp.eq.s32.totalorder %s11, 0
    %p115 = por %p113, %p114
    %p116 = scmp.ne.s32.totalorder %s108, %s110
    %p117 = scmp.eq.s32.totalorder %s16, 3
    %p118 = por %p116, %p117
    %p119 = scmp.ne.s32.totalorder %s110, %s111
    %p120 = scmp.eq.s32.totalorder %s16, 0
    %p121 = por %p119, %p120
    %p122 = scmp.ne.s32.totalorder %s110, %s111
    %p123 = scmp.eq.s32.totalorder %s17, 3
    %p124 = por %p122, %p123
    %p126 = scmp.ne.s32.totalorder %s111, %s125
    %p127 = scmp.eq.s32.totalorder %s17, 0
    %p128 = por %p126, %p127
    %s129 = ssub.s32 %s11, %s18
    %p130 = scmp.eq.s32.totalorder %s129, 0
    %s132 = sadd.s32 %s131, 1
    %s133 = scalar_select %p130, %s131, %s132
    %p136 = pneg %p130
    %p137 = scmp.eq.s32.totalorder %s11, 3
    %p138 = por %p136, %p137
    %p139 = scmp.ne.s32.totalorder %s131, %s134
    %p140 = scmp.eq.s32.totalorder %s11, 0
    %p141 = por %p139, %p140
    %p142 = scmp.ne.s32.totalorder %s131, %s134
    %p143 = scmp.eq.s32.totalorder %s16, 3
    %p144 = por %p142, %p143
    %p145 = scmp.ne.s32.totalorder %s134, %s135
    %p146 = scmp.eq.s32.totalorder %s16, 0
    %p147 = por %p145, %p146
    %p148 = scmp.ne.s32.totalorder %s134, %s135
    %p149 = scmp.eq.s32.totalorder %s17, 3
    %p150 = por %p148, %p149
    %p152 = scmp.ne.s32.totalorder %s135, %s151
    %p153 = scmp.eq.s32.totalorder %s17, 0
    %p154 = por %p152, %p153
    %p155 = scmp.le.s32.totalorder 1, %s11
    %p156 = scmp.lt.s32.totalorder %s11, 5
    %p157 = pnand %p155, %p156
    %p158 = pneg %p157
    // Predicated region
    $region9: #{tpu_custom_call.1} parent=5 // pred_check
      _
    $region10: #{tpu_custom_call.1} parent=5 // pred_check_branch
      %160 = sbr.rel (%p157) target = $region12
    $region11: #{tpu_custom_call.1} parent=5 // pred_region
      %s161 = ssub.s32 %s11, 1
      // Predicated region
      $region13: #{tpu_custom_call.1} parent=11 // pred_check
        %p162 = pneg %p58
      $region14: #{tpu_custom_call.1} parent=11 // pred_check_branch
        %164 = sbr.rel (%p162) target = $region16
      $region15: #{tpu_custom_call.1} parent=11 // pred_region
        _
      $region16: #{tpu_custom_call.1} parent=11 // pred_fallthru
        _
      // Predicated region
      $region17: #{tpu_custom_call.1} parent=11 // pred_check
        %p165 = pneg %p79
      $region18: #{tpu_custom_call.1} parent=11 // pred_check_branch
        %167 = sbr.rel (%p165) target = $region20
      $region19: #{tpu_custom_call.1} parent=11 // pred_region
        _
      $region20: #{tpu_custom_call.1} parent=11 // pred_fallthru
        _
      // Predicated region
      $region21: #{tpu_custom_call.1} parent=11 // pred_check
        %p168 = pneg %p100
      $region22: #{tpu_custom_call.1} parent=11 // pred_check_branch
        %170 = sbr.rel (%p168) target = $region24
      $region23: #{tpu_custom_call.1} parent=11 // pred_region
        _
      $region24: #{tpu_custom_call.1} parent=11 // pred_fallthru
        _
      // Predicated region
      $region25: #{tpu_custom_call.1} parent=11 // pred_check
        %p171 = pneg %p121
      $region26: #{tpu_custom_call.1} parent=11 // pred_check_branch
        %173 = sbr.rel (%p171) target = $region28
      $region27: #{tpu_custom_call.1} parent=11 // pred_region
        _
      $region28: #{tpu_custom_call.1} parent=11 // pred_fallthru
        _
    $region12: #{tpu_custom_call.1} parent=5 // pred_fallthru
      _
    %p174 = scmp.lt.s32.totalorder %s11, 4
    // Predicated region
    $region29: #{tpu_custom_call.1} parent=5 // pred_check
      %p175 = pneg %p174
    $region30: #{tpu_custom_call.1} parent=5 // pred_check_branch
      %177 = sbr.rel (%p175) target = $region32
    $region31: #{tpu_custom_call.1} parent=5 // pred_region
      // Predicated region
      $region33: #{tpu_custom_call.1} parent=31 // pred_check
        %p178 = pneg %p31
      $region34: #{tpu_custom_call.1} parent=31 // pred_check_branch
        %180 = sbr.rel (%p178) target = $region36
      $region35: #{tpu_custom_call.1} parent=31 // pred_region
        %s181 = smul.u32 4, %s11
        %p182 = scmp.lt.s32.totalorder %s181, 15
        %s183 = scalar_select %p182, %s181, 15
        %s184 = smul.addr %s183, 2
        %s185 = smul.addr %s184, 8
        %s186 = scalar_lea.vmem %s0, %s185
        %s187 = smul.u32 4, %s11
      $region36: #{tpu_custom_call.1} parent=31 // pred_fallthru
        _
    $region32: #{tpu_custom_call.1} parent=5 // pred_fallthru
      _
    %p188 = scmp.le.s32.totalorder 1, %s11
    %p189 = scmp.lt.s32.totalorder %s11, 5
    %p190 = pnand %p188, %p189
    %p191 = pneg %p190
    // Predicated region
    $region37: #{tpu_custom_call.1} parent=5 // pred_check
      _
    $region38: #{tpu_custom_call.1} parent=5 // pred_check_branch
      %193 = sbr.rel (%p190) target = $region40
    $region39: #{tpu_custom_call.1} parent=5 // pred_region
      %s194 = ssub.s32 %s11, 1
      %s195 = smul.u32 4, %s16
      %p196 = scmp.lt.s32.totalorder %s195, 15
      %s197 = scalar_select %p196, %s195, 15
      %s198 = smul.addr %s197, 2
      %s199 = smul.addr %s198, 8
      %s200 = scalar_lea.vmem %s0, %s199
      %p201 = pneg %p37
      %p202 = pneg %p34
      %p203 = pneg %p58
      %p204 = pneg %p55
      %p205 = pneg %p79
      %p206 = pneg %p76
      %p207 = pneg %p100
      %p208 = pneg %p97
      %p209 = pneg %p121
      %p210 = pneg %p118
      %p211 = pneg %p147
      %p212 = pneg %p144
      %s213 = smul.u32 4, %s16
      %p214 = scmp.lt.s32.totalorder %s213, 15
      %s215 = scalar_select %p214, %s213, 15
      %s216 = smul.addr %s215, 8
      %s217 = scalar_lea.vmem %s5, %s216
      %s218 = smul.u32 4, %s16
      %p219 = scmp.lt.s32.totalorder %s218, 15
      %s220 = scalar_select %p219, %s218, 15
      %s221 = smul.addr %s220, 2
      %s222 = smul.addr %s221, 8
      %s223 = scalar_lea.vmem %s0, %s222
      %s224 = smul.u32 4, %s16
      %s225 = smul.u32 4, %s16
      %p226 = scmp.lt.s32.totalorder %s225, 15
      %s227 = scalar_select %p226, %s225, 15
      %s228 = smul.addr %s227, 8
      %s229 = scalar_lea.vmem %s5, %s228
      %s230 = smul.u32 4, %s16
      %v231 = vld [vmem:[%s223] sm:$0xff]
      %v232 = vld [vmem:[%s223 + $0x8] sm:$0xff]
      %v233 = vld [vmem:[%s223 + $0x10] sm:$0xff]
      %v234 = vld [vmem:[%s223 + $0x18] sm:$0xff]
      %v235 = vld [vmem:[%s223 + $0x20] sm:$0xff]
      %v236 = vld [vmem:[%s223 + $0x28] sm:$0xff]
      %v237 = vld [vmem:[%s223 + $0x30] sm:$0xff]
      %v238 = vld [vmem:[%s223 + $0x38] sm:$0xff]
      %vm239 = vcmask 64512
      %v240 = vsel %vm239, %v231, 0.0
      %241 = vadd.xlane.f32.xlu0 %v240
      %v242 = vpop.xlane.xlu0 %241
      %v243 = vsel %vm239, %v233, 0.0
      %244 = vadd.xlane.f32.xlu0 %v243
      %v245 = vpop.xlane.xlu0 %244
      %v246 = vsel %vm239, %v235, 0.0
      %247 = vadd.xlane.f32.xlu0 %v246
      %v248 = vpop.xlane.xlu0 %247
      %v249 = vsel %vm239, %v237, 0.0
      %250 = vadd.xlane.f32.xlu0 %v249
      %v251 = vpop.xlane.xlu0 %250
      %v252 = vsel %vm239, %v232, 0.0
      %253 = vadd.xlane.f32.xlu0 %v252
      %v254 = vpop.xlane.xlu0 %253
      %v255 = vsel %vm239, %v234, 0.0
      %256 = vadd.xlane.f32.xlu0 %v255
      %v257 = vpop.xlane.xlu0 %256
      %v258 = vsel %vm239, %v236, 0.0
      %259 = vadd.xlane.f32.xlu0 %v258
      %v260 = vpop.xlane.xlu0 %259
      %v261 = vsel %vm239, %v238, 0.0
      %262 = vadd.xlane.f32.xlu0 %v261
      %v263 = vpop.xlane.xlu0 %262
      %v264 = vadd.f32 %v242, %v254
      %v265 = vadd.f32 %v245, %v257
      %v266 = vadd.f32 %v248, %v260
      %v267 = vadd.f32 %v251, %v263
      %v268 = vmul.f32 %v264, 0.0625
      %v269 = vmul.f32 %v265, 0.0625
      %v270 = vmul.f32 %v266, 0.0625
      %v271 = vmul.f32 %v267, 0.0625
      %v272 = vmul.f32 %v231, %v231
      %v273 = vmul.f32 %v233, %v233
      %v274 = vmul.f32 %v235, %v235
      %v275 = vmul.f32 %v237, %v237
      %v276 = vsel %vm239, %v272, 0.0
      %277 = vadd.xlane.f32.xlu0 %v276
      %v278 = vpop.xlane.xlu0 %277
      %v279 = vsel %vm239, %v273, 0.0
      %280 = vadd.xlane.f32.xlu0 %v279
      %v281 = vpop.xlane.xlu0 %280
      %v282 = vsel %vm239, %v274, 0.0
      %283 = vadd.xlane.f32.xlu0 %v282
      %v284 = vpop.xlane.xlu0 %283
      %v285 = vsel %vm239, %v275, 0.0
      %286 = vadd.xlane.f32.xlu0 %v285
      %v287 = vpop.xlane.xlu0 %286
      %v288 = vmul.f32 %v232, %v232
      %v289 = vmul.f32 %v234, %v234
      %v290 = vmul.f32 %v236, %v236
      %v291 = vmul.f32 %v238, %v238
      %v292 = vsel %vm239, %v288, 0.0
      %293 = vadd.xlane.f32.xlu0 %v292
      %v294 = vpop.xlane.xlu0 %293
      %v295 = vsel %vm239, %v289, 0.0
      %296 = vadd.xlane.f32.xlu0 %v295
      %v297 = vpop.xlane.xlu0 %296
      %v298 = vsel %vm239, %v290, 0.0
      %299 = vadd.xlane.f32.xlu0 %v298
      %v300 = vpop.xlane.xlu0 %299
      %v301 = vsel %vm239, %v291, 0.0
      %302 = vadd.xlane.f32.xlu0 %v301
      %v303 = vpop.xlane.xlu0 %302
      %v304 = vadd.f32 %v278, %v294
      %v305 = vadd.f32 %v281, %v297
      %v306 = vadd.f32 %v284, %v300
      %v307 = vadd.f32 %v287, %v303
      %v308 = vmul.f32 %v304, 0.0625
      %v309 = vmul.f32 %v305, 0.0625
      %v310 = vmul.f32 %v306, 0.0625
      %v311 = vmul.f32 %v307, 0.0625
      %v312 = vmul.f32 %v268, %v268
      %v313 = vmul.f32 %v269, %v269
      %v314 = vmul.f32 %v270, %v270
      %v315 = vmul.f32 %v271, %v271
      %v316 = vsub.f32 %v308, %v312
      %v317 = vsub.f32 %v309, %v313
      %v318 = vsub.f32 %v310, %v314
      %v319 = vsub.f32 %v311, %v315
      %v320 = vadd.f32 %v316, 1e-05
      %v321 = vadd.f32 %v317, 1e-05
      %v322 = vadd.f32 %v318, 1e-05
      %v323 = vadd.f32 %v319, 1e-05
      %v324 = vrsqrt.pop %v320
      %v325 = vmul.f32 %v324, %v320
      %v326 = vmul.f32 %v325, %v324
      %v327 = vmul.f32 0.5, %v326
      %v328 = vsub.f32 1.5, %v327
      %v329 = vmul.f32 %v324, %v328
      %vm330 = vweird.f32 %v320
      %vm331 = vweird.f32 %v324
      %vm332 = vmor %vm330, %vm331
      %v333 = vsel %vm332, %v324, %v329
      %v334 = vrsqrt.pop %v321
      %v335 = vmul.f32 %v334, %v321
      %v336 = vmul.f32 %v335, %v334
      %v337 = vmul.f32 0.5, %v336
      %v338 = vsub.f32 1.5, %v337
      %v339 = vmul.f32 %v334, %v338
      %vm340 = vweird.f32 %v321
      %vm341 = vweird.f32 %v334
      %vm342 = vmor %vm340, %vm341
      %v343 = vsel %vm342, %v334, %v339
      %v344 = vrsqrt.pop %v322
      %v345 = vmul.f32 %v344, %v322
      %v346 = vmul.f32 %v345, %v344
      %v347 = vmul.f32 0.5, %v346
      %v348 = vsub.f32 1.5, %v347
      %v349 = vmul.f32 %v344, %v348
      %vm350 = vweird.f32 %v322
      %vm351 = vweird.f32 %v344
      %vm352 = vmor %vm350, %vm351
      %v353 = vsel %vm352, %v344, %v349
      %v354 = vrsqrt.pop %v323
      %v355 = vmul.f32 %v354, %v323
      %v356 = vmul.f32 %v355, %v354
      %v357 = vmul.f32 0.5, %v356
      %v358 = vsub.f32 1.5, %v357
      %v359 = vmul.f32 %v354, %v358
      %vm360 = vweird.f32 %v323
      %vm361 = vweird.f32 %v354
      %vm362 = vmor %vm360, %vm361
      %v363 = vsel %vm362, %v354, %v359
      %v364 = vld [vmem:[%s1] sm:$0xff]
      %v365 = vld [vmem:[%s2] sm:$0xff]
      %v367 = vsel %vm239, %v232, 0
      %v370 = vsel %vm239, %v234, 0
      %v373 = vsel %vm239, %v236, 0
      %v376 = vsel %vm239, %v238, 0
      %378 = vmatpush.msra.mxu0 0.0
      %379 = vmatpush.msra.mxu0 0.0
      %380 = vmatpush.msra.mxu0 0.0
      %381 = vmatpush.msra.mxu0 0.0
      %382 = vmatpush.msra.mxu0 0.0
      %383 = vmatpush.msra.mxu0 0.0
      %384 = vmatpush.msra.mxu0 0.0
      %385 = vmatpush.msra.mxu0 0.0
      %386 = vmatpush.msra.mxu0 0.0
      %387 = vmatpush.msra.mxu0 0.0
      %388 = vmatpush.msra.mxu0 0.0
      %389 = vmatpush.msra.mxu0 0.0
      %390 = vmatpush.msra.mxu0 0.0
      %391 = vmatpush.msra.mxu0 0.0
      %392 = vmatpush.msra.mxu0 0.0
      %393 = vmatpush.msra.mxu0 %v365
      %394 = vmatmul.f32.gmra.mxu0 %v367
      %v395 = vpop.f32.mrf.mxu0
      %v396 = vadd.f32 0.0, %v395
      %397 = vmatmul.f32.gmra.mxu0 %v370
      %v398 = vpop.f32.mrf.mxu0
      %v399 = vadd.f32 0.0, %v398
      %400 = vmatmul.f32.gmra.mxu0 %v373
      %v401 = vpop.f32.mrf.mxu0
      %v402 = vadd.f32 0.0, %v401
      %403 = vmatmul.f32.gmra.mxu0 %v376
      %v404 = vpop.f32.mrf.mxu0
      %v405 = vadd.f32 0.0, %v404
      %406 = vdwg.mxu0
      %v408 = vsel %vm239, %v231, 0
      %v411 = vsel %vm239, %v233, 0
      %v414 = vsel %vm239, %v235, 0
      %v417 = vsel %vm239, %v237, 0
      %419 = vmatpush.msra.mxu0 0.0
      %420 = vmatpush.msra.mxu0 0.0
      %421 = vmatpush.msra.mxu0 0.0
      %422 = vmatpush.msra.mxu0 0.0
      %423 = vmatpush.msra.mxu0 0.0
      %424 = vmatpush.msra.mxu0 0.0
      %425 = vmatpush.msra.mxu0 0.0
      %426 = vmatpush.msra.mxu0 0.0
      %427 = vmatpush.msra.mxu0 0.0
      %428 = vmatpush.msra.mxu0 0.0
      %429 = vmatpush.msra.mxu0 0.0
      %430 = vmatpush.msra.mxu0 0.0
      %431 = vmatpush.msra.mxu0 0.0
      %432 = vmatpush.msra.mxu0 0.0
      %433 = vmatpush.msra.mxu0 0.0
      %434 = vmatpush.msra.mxu0 %v364
      %435 = vmatmul.f32.gmra.mxu0 %v408
      %v436 = vpop.f32.mrf.mxu0
      %v437 = vadd.f32 %v396, %v436
      %438 = vmatmul.f32.gmra.mxu0 %v411
      %v439 = vpop.f32.mrf.mxu0
      %v440 = vadd.f32 %v399, %v439
      %441 = vmatmul.f32.gmra.mxu0 %v414
      %v442 = vpop.f32.mrf.mxu0
      %v443 = vadd.f32 %v402, %v442
      %444 = vmatmul.f32.gmra.mxu0 %v417
      %v445 = vpop.f32.mrf.mxu0
      %v446 = vadd.f32 %v405, %v445
      %447 = vdwg.mxu0
      %v448 = vld [vmem:[%s3] sm:$0x1]
      %v450 = vperm.slane %v448, 0
      %v452 = vmul.f32 %v268, %v450
      %v453 = vmul.f32 %v269, %v450
      %v454 = vmul.f32 %v270, %v450
      %v455 = vmul.f32 %v271, %v450
      %v456 = vsub.f32 %v437, %v452
      %v457 = vsub.f32 %v440, %v453
      %v458 = vsub.f32 %v443, %v454
      %v459 = vsub.f32 %v446, %v455
      %v460 = vmul.f32 %v456, %v333
      %v461 = vmul.f32 %v457, %v343
      %v462 = vmul.f32 %v458, %v353
      %v463 = vmul.f32 %v459, %v363
      %v464 = vld [vmem:[%s4] sm:$0x1]
      %v466 = vperm.slane %v464, 0
      %v468 = vadd.f32 %v460, %v466
      %v469 = vadd.f32 %v461, %v466
      %v470 = vadd.f32 %v462, %v466
      %v471 = vadd.f32 %v463, %v466
      %472 = vst.msk [vmem:[%s229] sm:$0xff] %vm239, %v468
      %473 = vst.msk [vmem:[%s229 + $0x8] sm:$0xff] %vm239, %v469
      %474 = vst.msk [vmem:[%s229 + $0x10] sm:$0xff] %vm239, %v470
      %475 = vst.msk [vmem:[%s229 + $0x18] sm:$0xff] %vm239, %v471
      %s476 = smul.u32 4, %s16
      %p477 = scmp.lt.s32.totalorder %s476, 15
      %s478 = scalar_select %p477, %s476, 15
      %s479 = smul.addr %s478, 8
      %s480 = scalar_lea.vmem %s5, %s479
      // Predicated region
      $region41: #{tpu_custom_call.1} parent=39 // pred_check
        %p481 = pneg %p144
      $region42: #{tpu_custom_call.1} parent=39 // pred_check_branch
        %483 = sbr.rel (%p481) target = $region44
      $region43: #{tpu_custom_call.1} parent=39 // pred_region
        %s484 = smul.u32 4, %s16
      $region44: #{tpu_custom_call.1} parent=39 // pred_fallthru
        _
    $region40: #{tpu_custom_call.1} parent=5 // pred_fallthru
      _
    %p485 = scmp.le.s32.totalorder 2, %s11
    // Predicated region
    $region45: #{tpu_custom_call.1} parent=5 // pred_check
      %p486 = pneg %p485
    $region46: #{tpu_custom_call.1} parent=5 // pred_check_branch
      %488 = sbr.rel (%p486) target = $region48
    $region47: #{tpu_custom_call.1} parent=5 // pred_region
      %s489 = ssub.s32 %s11, 2
      // Predicated region
      $region49: #{tpu_custom_call.1} parent=47 // pred_check
        %p490 = pneg %p150
      $region50: #{tpu_custom_call.1} parent=47 // pred_check_branch
        %492 = sbr.rel (%p490) target = $region52
      $region51: #{tpu_custom_call.1} parent=47 // pred_region
        %s493 = smul.u32 4, %s17
        %p494 = scmp.lt.s32.totalorder %s493, 15
        %s495 = scalar_select %p494, %s493, 15
        %s496 = smul.addr %s495, 8
        %s497 = scalar_lea.vmem %s5, %s496
      $region52: #{tpu_custom_call.1} parent=47 // pred_fallthru
        _
    $region48: #{tpu_custom_call.1} parent=5 // pred_fallthru
      _
  $region6: #{tpu_custom_call.1} parent=0 // loop_footer
    %s15 = sadd.s32 1, %s11
  $region7: #{tpu_custom_call.1} parent=0 // loop_footer_branch
    %10 = sbr.rel target = $region3
  $region8: #{tpu_custom_call.1} parent=0 // loop_exit
    _

</llo_original>
